<compile_context>
chip_gen: v6e
topology: v6e:2x2x1
jax: 0.10.0
libtpu: 0.0.40
codegen_flags: <defaults>
</compile_context>

<pallas_src>
import jax
import jax.numpy as jnp
import numpy as np
from jax import lax
from jax.experimental import pallas as pl
from jax.experimental.pallas import tpu as pltpu

HIDDEN = 32   # hidden_size
VOCAB = 64    # output_size
MAXLEN = 8    # max_length (number of encoder outputs)
LANE = 128    # TPU lane width; slab segments are padded to this

assert 4 * HIDDEN == LANE, "packed GRU gate layout assumes 4H == 128"
assert VOCAB + HIDDEN + MAXLEN <= LANE, "packed output row must fit in 128 lanes"


def attn_decoder_seq_kernel(
    toks_ref,   # SMEM (S,) int32   decoder input tokens (scalar prefetch)
    emb_ref,    # (V, H)            embedding table (VMEM resident)
    h0_ref,     # (1, H)            initial hidden state
    wgru_ref,   # (2H, 4H)          fused GRU weight: rows [x ; h], cols [r|z|gi_n|gh_n]
    wslab_ref,  # (H, 3*128)        [W_attn@enc.T |pad || W_c_top |pad || W_y |pad]
    ewc_ref,    # (L, H)            enc @ W_c_bot
    bslab_ref,  # (1, 4*128)        [b_gru(4H) || b_attn@enc.T |pad || b_c |pad || b_y |pad]
    out_ref,    # (S, 128)          per-step [log_softmax(V) | hidden(H) | attn_w(L) | pad]
):
    H, V, L = HIDDEN, VOCAB, MAXLEN
    S = out_ref.shape[0]

    # Zero-cost ref views onto 128-aligned slab segments (no per-iter slicing).
    w_post_ref = wslab_ref.at[:, 0:2 * LANE]        # (H, 256) -> [scores | W_c_top]
    w_y_ref = wslab_ref.at[:, 2 * LANE:3 * LANE]    # (H, 128) -> W_y zero-padded

    # Small biases hoisted once (outside the loop).
    b_gru = bslab_ref[:, 0:LANE]                    # (1, 4H)
    be = bslab_ref[:, LANE:LANE + L]                # (1, L)
    b_c = bslab_ref[:, 2 * LANE:2 * LANE + H]       # (1, H)
    b_y = bslab_ref[:, 3 * LANE:3 * LANE + V]       # (1, V)
    pad_row = jnp.zeros((1, LANE - V - H - L), jnp.float32)

    def step(s, h):
        # ---- embedding gather (dropout == identity: eval mode) ----
        tok = toks_ref[s]
        x = emb_ref[pl.ds(tok, 1), :]                                  # (1, H)

        # ---- GRU cell: single fused matmul, gate order r, z, n ----
        xh = jnp.concatenate([x, h], axis=1)                           # (1, 2H)
        g = jnp.dot(xh, wgru_ref[...],
                    preferred_element_type=jnp.float32) + b_gru        # (1, 4H)
        r = jax.nn.sigmoid(g[:, 0:H])
        z = jax.nn.sigmoid(g[:, H:2 * H])
        n = jnp.tanh(g[:, 2 * H:3 * H] + r * g[:, 3 * H:4 * H])
        h_new = (1.0 - z) * n + z * h                                  # (1, H)

        # ---- fused post-hidden projection: attention scores + W_c h-part ----
        post = jnp.dot(h_new, w_post_ref[...],
                       preferred_element_type=jnp.float32)             # (1, 256)
        scores = post[:, 0:L] + be                                     # (1, L)
        hpart = post[:, LANE:LANE + H]                                 # (1, H)

        scores = scores - jnp.max(scores, axis=1, keepdims=True)
        exp_s = jnp.exp(scores)
        attn_w = exp_s / jnp.sum(exp_s, axis=1, keepdims=True)         # (1, L)

        # hs = tanh(W_c [h_new ; c_t] + b_c), with c_t @ W_c_bot folded into Ewc
        hs = jnp.tanh(
            hpart
            + jnp.dot(attn_w, ewc_ref[...], preferred_element_type=jnp.float32)
            + b_c)                                                     # (1, H)

        # ---- output projection + log_softmax ----
        logits = jnp.dot(hs, w_y_ref[...],
                         preferred_element_type=jnp.float32)[:, 0:V] + b_y
        m = jnp.max(logits, axis=1, keepdims=True)
        shifted = logits - m
        logp = shifted - jnp.log(jnp.sum(jnp.exp(shifted), axis=1, keepdims=True))

        # ---- single lane-dense packed writeback per step ----
        out_ref[pl.ds(s, 1), :] = jnp.concatenate(
            [logp, h_new, attn_w, pad_row], axis=1)
        return h_new

    lax.fori_loop(0, S, step, h0_ref[...])


def pack_params(params, encoder_outputs):
    """Pack params + per-sequence encoder precomputes into 128-lane-aligned
    slabs.  Done once per (params, encoder sequence); reused for every step."""
    H, V, L = HIDDEN, VOCAB, MAXLEN
    f32 = jnp.float32
    enc = encoder_outputs.astype(f32)

    w_ih, w_hh = params["w_ih"], params["w_hh"]          # (3, H, H) each, pre-transposed
    b_ih, b_hh = params["b_ih"], params["b_hh"]          # (3, 1, H) each
    zhh = jnp.zeros((H, H), f32)
    w_gru = jnp.concatenate([
        jnp.concatenate([w_ih[0], w_ih[1], w_ih[2], zhh], axis=1),   # x rows
        jnp.concatenate([w_hh[0], w_hh[1], zhh, w_hh[2]], axis=1),   # h rows
    ], axis=0)                                                        # (2H, 4H)
    b_gru = jnp.concatenate(
        [b_ih[0] + b_hh[0], b_ih[1] + b_hh[1], b_ih[2], b_hh[2]], axis=1)  # (1, 4H)

    # Encoder-side precomputes (hoisted off the per-step critical path).
    we = params["w_attn"] @ enc.T                        # (H, L)
    be = params["b_attn"] @ enc.T                        # (1, L)
    wc_top, wc_bot = params["w_c"][:H], params["w_c"][H:]
    ewc = enc @ wc_bot                                   # (L, H)

    def lane_pad(a, width=LANE):
        return jnp.pad(a, ((0, 0), (0, width - a.shape[1])))

    w_slab = jnp.concatenate(
        [lane_pad(we), lane_pad(wc_top), lane_pad(params["w_y"])], axis=1)   # (H, 384)
    b_slab = jnp.concatenate(
        [lane_pad(b_gru), lane_pad(be), lane_pad(params["b_c"]),
         lane_pad(params["b_y"])], axis=1)                                   # (1, 512)

    return dict(emb=params["embedding"].astype(f32), w_gru=w_gru,
                w_slab=w_slab, ewc=ewc, b_slab=b_slab)


def attn_decoder_decode(packed, tokens, hidden):
    """Run S (teacher-forced) decode steps in one pallas_call.

    Returns (log_softmax outputs (S, V), hidden states (S, 1, H),
             attention weights (S, L)).  S == 1 reproduces the module forward.
    """
    H, V, L = HIDDEN, VOCAB, MAXLEN
    toks = jnp.asarray(tokens, jnp.int32).reshape(-1)
    S = int(toks.shape[0])
    h0 = hidden.reshape(1, H).astype(jnp.float32)

    idx0 = lambda i, toks_ref: (0, 0)
    grid_spec = pltpu.PrefetchScalarGridSpec(
        num_scalar_prefetch=1,
        grid=(1,),
        in_specs=[
            pl.BlockSpec((V, H), idx0),              # embedding table
            pl.BlockSpec((1, H), idx0),              # initial hidden
            pl.BlockSpec((2 * H, 4 * H), idx0),      # fused GRU weight
            pl.BlockSpec((H, 3 * LANE), idx0),       # packed weight slab
            pl.BlockSpec((L, H), idx0),              # enc @ W_c_bot
            pl.BlockSpec((1, 4 * LANE), idx0),       # packed bias slab
        ],
        out_specs=pl.BlockSpec((S, LANE), idx0),
    )

    out_packed = pl.pallas_call(
        attn_decoder_seq_kernel,
        out_shape=jax.ShapeDtypeStruct((S, LANE), jnp.float32),
        grid_spec=grid_spec,
        compiler_params=pltpu.CompilerParams(dimension_semantics=("arbitrary",)),
    )(toks, packed["emb"], h0, packed["w_gru"], packed["w_slab"],
      packed["ewc"], packed["b_slab"])

    logp = out_packed[:, 0:V]
    hiddens = out_packed[:, V:V + H].reshape(S, 1, H)
    attn_w = out_packed[:, V + H:V + H + L]
    return logp, hiddens, attn_w


def reference_forward(params, token, hidden, encoder_outputs):
    """Pure-JAX reference mirroring the PyTorch single-step forward (eval)."""
    H = HIDDEN
    x = params["embedding"][token].reshape(1, H)
    h = hidden.reshape(1, H)

    def proj(v, w, b):
        return v @ w + b

    r = jax.nn.sigmoid(proj(x, params["w_ih"][0], params["b_ih"][0])
                       + proj(h, params["w_hh"][0], params["b_hh"][0]))
    z = jax.nn.sigmoid(proj(x, params["w_ih"][1], params["b_ih"][1])
                       + proj(h, params["w_hh"][1], params["b_hh"][1]))
    n = jnp.tanh(proj(x, params["w_ih"][2], params["b_ih"][2])
                 + r * proj(h, params["w_hh"][2], params["b_hh"][2]))
    h_new = (1.0 - z) * n + z * h
    attn_h = proj(h_new, params["w_attn"], params["b_attn"])
    attn_w = jax.nn.softmax(attn_h @ encoder_outputs.T, axis=1)
    c_t = attn_w @ encoder_outputs
    hs = jnp.tanh(jnp.concatenate([h_new, c_t], axis=1) @ params["w_c"]
                  + params["b_c"])
    out = jax.nn.log_softmax(proj(hs, params["w_y"], params["b_y"]), axis=1)
    return out, h_new.reshape(1, 1, H), attn_w


def reference_decode(params, tokens, hidden, encoder_outputs):
    outs, hids, ws = [], [], []
    h = hidden
    for t in range(int(tokens.shape[0])):
        out, h, w = reference_forward(params, tokens[t], h, encoder_outputs)
        outs.append(out)
        hids.append(h.reshape(1, 1, HIDDEN))
        ws.append(w)
    return (jnp.concatenate(outs, axis=0),
            jnp.concatenate(hids, axis=0),
            jnp.concatenate(ws, axis=0))


if __name__ == "__main__":
    key = jax.random.PRNGKey(0)
    keys = jax.random.split(key, 16)
    H, V, L = HIDDEN, VOCAB, MAXLEN

    def uni(k, shape, scale):
        return jax.random.uniform(k, shape, jnp.float32, -scale, scale)

    s = 1.0 / (H ** 0.5)          # GRU / H-in Linear init scale
    s2 = 1.0 / ((2 * H) ** 0.5)   # w_c init scale (in_features = 2H)

    params = dict(
        embedding=jax.random.normal(keys[0], (V, H), jnp.float32),
        w_ih=uni(keys[1], (3, H, H), s),       # per-gate (r, z, n), pre-transposed
        w_hh=uni(keys[2], (3, H, H), s),
        b_ih=uni(keys[3], (3, 1, H), s),
        b_hh=uni(keys[4], (3, 1, H), s),
        w_attn=uni(keys[5], (H, H), s),
        b_attn=uni(keys[6], (1, H), s),
        w_c=uni(keys[7], (2 * H, H), s2),      # rows 0:H -> h_new, H:2H -> c_t
        b_c=uni(keys[9], (1, H), s2),
        w_y=uni(keys[10], (H, V), s),
        b_y=uni(keys[11], (1, V), s),
    )

    encoder_outputs = jax.random.normal(keys[12], (L, H), jnp.float32)
    tokens = jnp.array([5, 17, 3, 42, 0, 63, 8, 21], dtype=jnp.int32)
    hidden0 = jnp.zeros((1, 1, H), jnp.float32)         # init_hidden()

    packed = pack_params(params, encoder_outputs)

    # ---- multi-step (teacher-forced) decode: one pallas_call for all steps ----
    outs, hids, attn_ws = attn_decoder_decode(packed, tokens, hidden0)
    jax.block_until_ready((outs, hids, attn_ws))

    ref_outs, ref_hids, ref_ws = reference_decode(params, tokens, hidden0,
                                                  encoder_outputs)
    assert outs.shape == (tokens.shape[0], V)
    assert hids.shape == (tokens.shape[0], 1, H)
    assert attn_ws.shape == (tokens.shape[0], L)
    assert np.allclose(np.asarray(outs), np.asarray(ref_outs), atol=2e-4)
    assert np.allclose(np.asarray(hids), np.asarray(ref_hids), atol=2e-4)
    assert np.allclose(np.asarray(attn_ws), np.asarray(ref_ws), atol=2e-4)

    # ---- single-step variant == the module's forward ----
    out1, hid1, w1 = attn_decoder_decode(packed, tokens[:1], hidden0)
    jax.block_until_ready((out1, hid1, w1))
    r_out1, r_hid1, r_w1 = reference_forward(params, tokens[0], hidden0,
                                             encoder_outputs)
    assert np.allclose(np.asarray(out1[0:1]), np.asarray(r_out1), atol=2e-4)
    assert np.allclose(np.asarray(hid1[0]), np.asarray(r_hid1.reshape(1, H)),
                       atol=2e-4)
    assert np.allclose(np.asarray(w1[0:1]), np.asarray(r_w1), atol=2e-4)

    print("KERNEL_OK")
</pallas_src>

<mosaic_0001>
module attributes {stable_mosaic.version = 11 : i64} {
  func.func @attn_decoder_seq_kernel(%arg0: i32, %arg1: memref<8xi32, #tpu.memory_space<smem>>, %arg2: memref<64x32xf32, #tpu.memory_space<vmem>>, %arg3: memref<1x32xf32, #tpu.memory_space<vmem>>, %arg4: memref<64x128xf32, #tpu.memory_space<vmem>>, %arg5: memref<32x384xf32, #tpu.memory_space<vmem>>, %arg6: memref<8x32xf32, #tpu.memory_space<vmem>>, %arg7: memref<1x512xf32, #tpu.memory_space<vmem>>, %arg8: memref<8x128xf32, #tpu.memory_space<vmem>>) attributes {dimension_semantics = [#tpu.dimension_semantics<arbitrary>], iteration_bounds = array<i64: 1>, scalar_prefetch = 1 : i64, scratch_operands = 0 : i64, tpu.core_type = #tpu.core_type<tc>, window_params = [{pipeline_mode = #tpu.pipeline_mode<synchronous>, transform_indices = @transform_0, window_bounds = array<i64: 64, 32>}, {pipeline_mode = #tpu.pipeline_mode<synchronous>, transform_indices = @transform_1, window_bounds = array<i64: 1, 32>}, {pipeline_mode = #tpu.pipeline_mode<synchronous>, transform_indices = @transform_2, window_bounds = array<i64: 64, 128>}, {pipeline_mode = #tpu.pipeline_mode<synchronous>, transform_indices = @transform_3, window_bounds = array<i64: 32, 384>}, {pipeline_mode = #tpu.pipeline_mode<synchronous>, transform_indices = @transform_4, window_bounds = array<i64: 8, 32>}, {pipeline_mode = #tpu.pipeline_mode<synchronous>, transform_indices = @transform_5, window_bounds = array<i64: 1, 512>}, {pipeline_mode = #tpu.pipeline_mode<synchronous>, transform_indices = @transform_6, window_bounds = array<i64: 8, 128>}]} {
    %c0 = arith.constant 0 : index
    %c0_0 = arith.constant 0 : index
    %0 = vector.load %arg7[%c0, %c0_0] : memref<1x512xf32, #tpu.memory_space<vmem>>, vector<1x128xf32>
    %c0_1 = arith.constant 0 : index
    %c128 = arith.constant 128 : index
    %1 = vector.load %arg7[%c0_1, %c128] : memref<1x512xf32, #tpu.memory_space<vmem>>, vector<1x8xf32>
    %c0_2 = arith.constant 0 : index
    %c256 = arith.constant 256 : index
    %2 = vector.load %arg7[%c0_2, %c256] : memref<1x512xf32, #tpu.memory_space<vmem>>, vector<1x32xf32>
    %c0_3 = arith.constant 0 : index
    %c384 = arith.constant 384 : index
    %3 = vector.load %arg7[%c0_3, %c384] : memref<1x512xf32, #tpu.memory_space<vmem>>, vector<1x64xf32>
    %cst = arith.constant 0.000000e+00 : f32
    %4 = vector.broadcast %cst : f32 to vector<1x24xf32>
    %c0_4 = arith.constant 0 : index
    %c0_5 = arith.constant 0 : index
    %5 = vector.load %arg3[%c0_4, %c0_5] : memref<1x32xf32, #tpu.memory_space<vmem>>, vector<1x32xf32>
    %c0_i32 = arith.constant 0 : i32
    %c8_i32 = arith.constant 8 : i32
    %6 = arith.addi %c0_i32, %c8_i32 : i32
    %c1_i32 = arith.constant 1 : i32
    %7 = scf.for %arg9 = %c0_i32 to %6 step %c1_i32 iter_args(%arg10 = %5) -> (vector<1x32xf32>)  : i32 {
      %8 = arith.index_cast %arg9 : i32 to index
      %9 = memref.load %arg1[%8] : memref<8xi32, #tpu.memory_space<smem>>
      %10 = arith.index_cast %9 : i32 to index
      %c0_7 = arith.constant 0 : index
      %11 = vector.load %arg2[%10, %c0_7] : memref<64x32xf32, #tpu.memory_space<vmem>>, vector<1x32xf32>
      %12 = tpu.concatenate %11, %arg10 in 1 : vector<1x32xf32>, vector<1x32xf32> -> vector<1x64xf32>
      %c0_8 = arith.constant 0 : index
      %c0_9 = arith.constant 0 : index
      %13 = vector.load %arg4[%c0_8, %c0_9] : memref<64x128xf32, #tpu.memory_space<vmem>>, vector<64x128xf32>
      %cst_10 = arith.constant dense<0.000000e+00> : vector<1x128xf32>
      %14 = tpu.matmul %12, %13, %cst_10 {dimension_numbers = #tpu.dot_dimension_numbers<[1], [0], [0], [1], [0, 0, 1, 1], [], []>} : vector<1x64xf32>, vector<64x128xf32>, vector<1x128xf32> -> vector<1x128xf32>
      %15 = arith.addf %14, %0 : vector<1x128xf32>
      %16 = vector.extract_strided_slice %15 {offsets = [0, 0], sizes = [1, 32], strides = [1, 1]} : vector<1x128xf32> to vector<1x32xf32>
      %17 = arith.negf %16 : vector<1x32xf32>
      %18 = math.exp %17 : vector<1x32xf32>
      %cst_11 = arith.constant 1.000000e+00 : f32
      %19 = vector.broadcast %cst_11 : f32 to vector<1x32xf32>
      %20 = arith.addf %19, %18 : vector<1x32xf32>
      %21 = arith.divf %19, %20 : vector<1x32xf32>
      %22 = vector.extract_strided_slice %15 {offsets = [0, 32], sizes = [1, 32], strides = [1, 1]} : vector<1x128xf32> to vector<1x32xf32>
      %23 = arith.negf %22 : vector<1x32xf32>
      %24 = math.exp %23 : vector<1x32xf32>
      %cst_12 = arith.constant 1.000000e+00 : f32
      %25 = vector.broadcast %cst_12 : f32 to vector<1x32xf32>
      %26 = arith.addf %25, %24 : vector<1x32xf32>
      %27 = arith.divf %25, %26 : vector<1x32xf32>
      %28 = vector.extract_strided_slice %15 {offsets = [0, 64], sizes = [1, 32], strides = [1, 1]} : vector<1x128xf32> to vector<1x32xf32>
      %29 = vector.extract_strided_slice %15 {offsets = [0, 96], sizes = [1, 32], strides = [1, 1]} : vector<1x128xf32> to vector<1x32xf32>
      %30 = arith.mulf %21, %29 : vector<1x32xf32>
      %31 = arith.addf %28, %30 : vector<1x32xf32>
      %32 = math.tanh %31 : vector<1x32xf32>
      %cst_13 = arith.constant 1.000000e+00 : f32
      %33 = vector.broadcast %cst_13 : f32 to vector<1x32xf32>
      %34 = arith.subf %33, %27 : vector<1x32xf32>
      %35 = arith.mulf %34, %32 : vector<1x32xf32>
      %36 = arith.mulf %27, %arg10 : vector<1x32xf32>
      %37 = arith.addf %35, %36 : vector<1x32xf32>
      %c0_14 = arith.constant 0 : index
      %c0_15 = arith.constant 0 : index
      %38 = vector.load %arg5[%c0_14, %c0_15] : memref<32x384xf32, #tpu.memory_space<vmem>>, vector<32x256xf32>
      %cst_16 = arith.constant dense<0.000000e+00> : vector<1x256xf32>
      %39 = tpu.matmul %37, %38, %cst_16 {dimension_numbers = #tpu.dot_dimension_numbers<[1], [0], [0], [1], [0, 0, 1, 1], [], []>} : vector<1x32xf32>, vector<32x256xf32>, vector<1x256xf32> -> vector<1x256xf32>
      %40 = vector.extract_strided_slice %39 {offsets = [0, 0], sizes = [1, 8], strides = [1, 1]} : vector<1x256xf32> to vector<1x8xf32>
      %41 = arith.addf %40, %1 : vector<1x8xf32>
      %42 = vector.extract_strided_slice %39 {offsets = [0, 128], sizes = [1, 32], strides = [1, 1]} : vector<1x256xf32> to vector<1x32xf32>
      %cst_17 = arith.constant dense<0xFF800000> : vector<1xf32>
      %43 = vector.multi_reduction <maximumf>, %41, %cst_17 [1] : vector<1x8xf32> to vector<1xf32>
      %44 = vector.shape_cast %43 : vector<1xf32> to vector<1x1xf32>
      %45 = vector.broadcast %44 : vector<1x1xf32> to vector<1x8xf32>
      %46 = arith.subf %41, %45 : vector<1x8xf32>
      %47 = math.exp %46 : vector<1x8xf32>
      %cst_18 = arith.constant dense<0.000000e+00> : vector<1xf32>
      %48 = vector.multi_reduction <add>, %47, %cst_18 [1] : vector<1x8xf32> to vector<1xf32>
      %49 = vector.shape_cast %48 : vector<1xf32> to vector<1x1xf32>
      %50 = vector.broadcast %49 : vector<1x1xf32> to vector<1x8xf32>
      %51 = arith.divf %47, %50 : vector<1x8xf32>
      %c0_19 = arith.constant 0 : index
      %c0_20 = arith.constant 0 : index
      %52 = vector.load %arg6[%c0_19, %c0_20] : memref<8x32xf32, #tpu.memory_space<vmem>>, vector<8x32xf32>
      %cst_21 = arith.constant dense<0.000000e+00> : vector<1x32xf32>
      %53 = tpu.matmul %51, %52, %cst_21 {dimension_numbers = #tpu.dot_dimension_numbers<[1], [0], [0], [1], [0, 0, 1, 1], [], []>} : vector<1x8xf32>, vector<8x32xf32>, vector<1x32xf32> -> vector<1x32xf32>
      %54 = arith.addf %42, %53 : vector<1x32xf32>
      %55 = arith.addf %54, %2 : vector<1x32xf32>
      %56 = math.tanh %55 : vector<1x32xf32>
      %c0_22 = arith.constant 0 : index
      %c256_23 = arith.constant 256 : index
      %57 = vector.load %arg5[%c0_22, %c256_23] : memref<32x384xf32, #tpu.memory_space<vmem>>, vector<32x128xf32>
      %cst_24 = arith.constant dense<0.000000e+00> : vector<1x128xf32>
      %58 = tpu.matmul %56, %57, %cst_24 {dimension_numbers = #tpu.dot_dimension_numbers<[1], [0], [0], [1], [0, 0, 1, 1], [], []>} : vector<1x32xf32>, vector<32x128xf32>, vector<1x128xf32> -> vector<1x128xf32>
      %59 = vector.extract_strided_slice %58 {offsets = [0, 0], sizes = [1, 64], strides = [1, 1]} : vector<1x128xf32> to vector<1x64xf32>
      %60 = arith.addf %59, %3 : vector<1x64xf32>
      %cst_25 = arith.constant dense<0xFF800000> : vector<1xf32>
      %61 = vector.multi_reduction <maximumf>, %60, %cst_25 [1] : vector<1x64xf32> to vector<1xf32>
      %62 = vector.shape_cast %61 : vector<1xf32> to vector<1x1xf32>
      %63 = vector.broadcast %62 : vector<1x1xf32> to vector<1x64xf32>
      %64 = arith.subf %60, %63 : vector<1x64xf32>
      %65 = math.exp %64 : vector<1x64xf32>
      %cst_26 = arith.constant dense<0.000000e+00> : vector<1xf32>
      %66 = vector.multi_reduction <add>, %65, %cst_26 [1] : vector<1x64xf32> to vector<1xf32>
      %67 = vector.shape_cast %66 : vector<1xf32> to vector<1x1xf32>
      %68 = math.log %67 : vector<1x1xf32>
      %69 = vector.broadcast %68 : vector<1x1xf32> to vector<1x64xf32>
      %70 = arith.subf %64, %69 : vector<1x64xf32>
      %71 = tpu.concatenate %70, %37, %51, %4 in 1 : vector<1x64xf32>, vector<1x32xf32>, vector<1x8xf32>, vector<1x24xf32> -> vector<1x128xf32>
      %72 = arith.index_cast %arg9 : i32 to index
      %c0_27 = arith.constant 0 : index
      %73 = vector.load %arg8[%72, %c0_27] : memref<8x128xf32, #tpu.memory_space<vmem>>, vector<1x128xf32>
      tpu.vector_store %arg8[%72, %c0_27], %71 {strides = array<i32>} : memref<8x128xf32, #tpu.memory_space<vmem>>, vector<1x128xf32>,
      scf.yield %37 : vector<1x32xf32>
    }
    %c8_i32_6 = arith.constant 8 : i32
    return
  }
  func.func @transform_0(%arg0: i32, %arg1: memref<8xi32, #tpu.memory_space<smem>>) -> (i32, i32) {
    %c0_i32 = arith.constant 0 : i32
    %c0_i32_0 = arith.constant 0 : i32
    %c0_i32_1 = arith.constant 0 : i32
    return %c0_i32, %c0_i32_0 : i32, i32
  }
  func.func @transform_1(%arg0: i32, %arg1: memref<8xi32, #tpu.memory_space<smem>>) -> (i32, i32) {
    %c0_i32 = arith.constant 0 : i32
    %c0_i32_0 = arith.constant 0 : i32
    %c0_i32_1 = arith.constant 0 : i32
    return %c0_i32, %c0_i32_0 : i32, i32
  }
  func.func @transform_2(%arg0: i32, %arg1: memref<8xi32, #tpu.memory_space<smem>>) -> (i32, i32) {
    %c0_i32 = arith.constant 0 : i32
    %c0_i32_0 = arith.constant 0 : i32
    %c0_i32_1 = arith.constant 0 : i32
    return %c0_i32, %c0_i32_0 : i32, i32
  }
  func.func @transform_3(%arg0: i32, %arg1: memref<8xi32, #tpu.memory_space<smem>>) -> (i32, i32) {
    %c0_i32 = arith.constant 0 : i32
    %c0_i32_0 = arith.constant 0 : i32
    %c0_i32_1 = arith.constant 0 : i32
    return %c0_i32, %c0_i32_0 : i32, i32
  }
  func.func @transform_4(%arg0: i32, %arg1: memref<8xi32, #tpu.memory_space<smem>>) -> (i32, i32) {
    %c0_i32 = arith.constant 0 : i32
    %c0_i32_0 = arith.constant 0 : i32
    %c0_i32_1 = arith.constant 0 : i32
    return %c0_i32, %c0_i32_0 : i32, i32
  }
  func.func @transform_5(%arg0: i32, %arg1: memref<8xi32, #tpu.memory_space<smem>>) -> (i32, i32) {
    %c0_i32 = arith.constant 0 : i32
    %c0_i32_0 = arith.constant 0 : i32
    %c0_i32_1 = arith.constant 0 : i32
    return %c0_i32, %c0_i32_0 : i32, i32
  }
  func.func @transform_6(%arg0: i32, %arg1: memref<8xi32, #tpu.memory_space<smem>>) -> (i32, i32) {
    %c0_i32 = arith.constant 0 : i32
    %c0_i32_0 = arith.constant 0 : i32
    %c0_i32_1 = arith.constant 0 : i32
    return %c0_i32, %c0_i32_0 : i32, i32
  }
}

</mosaic_0001>

<llo_original>
// kernel: tpu_custom_call.1
$region0: #{tpu_custom_call.1}
  #allocation0 [shape = 'u32[]', space=smem, size = 0x4, offset = 0x4, fixed_abs, tag = 'smem constant byte address 0x4 - core index']
  #allocation1 [shape = 'u32[144,128]{1,0:T(1,128)}', space=vmem, size = 0x12000, scoped, tag = 'internal scratch']
  #allocation2 [shape = 's32[1]{0}', space=sflag, size = 0x4, scoped, tag = 'scoped memory for tpu_custom_call.1']
  #allocation3 [shape = 'u8[512]{0}', space=smem, size = 0x200, scoped, tag = 'prefetched SMEM operand 0']
  %s0 = inlined_call_operand.vmem [shape: s32[8], index: 0, kind: input, shape index: {}]
  %s1 = inlined_call_operand.vmem [shape: f32[64,32], index: 1, kind: input, shape index: {}]
  %s2 = inlined_call_operand.hbm [shape: f32[1,32], index: 2, kind: input, shape index: {}]
  %s3 = inlined_call_operand.hbm [shape: f32[64,128], index: 3, kind: input, shape index: {}]
  %s4 = inlined_call_operand.vmem [shape: f32[32,384], index: 4, kind: input, shape index: {}]
  %s5 = inlined_call_operand.vmem [shape: f32[8,32], index: 5, kind: input, shape index: {}]
  %s6 = inlined_call_operand.hbm [shape: f32[1,512], index: 6, kind: input, shape index: {}]
  %s7 = inlined_call_operand.hbm [shape: f32[8,128], index: 7, kind: output, shape index: {}]
  %s8 = sld [smem:[#allocation0]]
  $region53: #{tpu_custom_call.1} parent=0
    _
  %s10 = ssub.s32 1, %s8
  %s11 = scalar_select 0, %s10, %s8
  %s12 = sshll.u32 %s0, 4
  %s13 = int_to_ptr.vmem [resolvable:$true] %s12
  %15 = dma.vmem_to_smem %s13, 16, [#allocation3], [#allocation2]
  %16 = dma.done [#allocation2], 16
  %17 = sfence
  $region1: #{tpu_custom_call.1} parent=0
    #allocation4 [shape = 'u8[512]{0}', space=vmem, size = 0x400, scoped, tag = 'input window, operand 2, single buffered']
    #allocation5 [shape = 's32[1]{0}', space=sflag, size = 0x4, scoped, tag = 'scoped memory for tpu_custom_call.1']
    #allocation6 [shape = 's32[1]{0}', space=sflag, size = 0x4, scoped, tag = 'scoped memory for tpu_custom_call.1']
    #allocation7 [shape = 'u8[32768]{0}', space=vmem, size = 0x8000, scoped, tag = 'input window, operand 3, single buffered']
    #allocation8 [shape = 's32[1]{0}', space=sflag, size = 0x4, scoped, tag = 'scoped memory for tpu_custom_call.1']
    #allocation9 [shape = 'u8[2048]{0}', space=vmem, size = 0x800, scoped, tag = 'input window, operand 6, single buffered']
    #allocation10 [shape = 'u8[4096]{0}', space=vmem, size = 0x1000, scoped, tag = 'output window, operand 0, single buffered']
    %18 = vsyncpa [#allocation5], 0
    %19 = vsyncpa [#allocation8], 0
    %20 = vsyncpa [#allocation6], 0
    // Predicated region
    $region2: #{tpu_custom_call.1} parent=1 // pred_check
      _
    $region3: #{tpu_custom_call.1} parent=1 // pred_check_branch
      %22 = sbr.rel (0) target = $region5
    $region4: #{tpu_custom_call.1} parent=1 // pred_region
      _
    $region5: #{tpu_custom_call.1} parent=1 // pred_fallthru
      _
    // Predicated region
    $region6: #{tpu_custom_call.1} parent=1 // pred_check
      _
    $region7: #{tpu_custom_call.1} parent=1 // pred_check_branch
      %24 = sbr.rel (0) target = $region9
    $region8: #{tpu_custom_call.1} parent=1 // pred_region
      %s26 = ssub.s32 16, 16
      %27 = vsyncadd [#allocation5], %s26
      %s29 = sshll.u32 [#allocation4], 4
      %s30 = int_to_ptr.vmem [resolvable:$true] %s29
      %32 = dma.hbm_to_vmem [thread:$0]  %s2, 16, %s30, [#allocation5]
    $region9: #{tpu_custom_call.1} parent=1 // pred_fallthru
      _
    // Predicated region
    $region10: #{tpu_custom_call.1} parent=1 // pred_check
      _
    $region11: #{tpu_custom_call.1} parent=1 // pred_check_branch
      %34 = sbr.rel (0) target = $region13
    $region12: #{tpu_custom_call.1} parent=1 // pred_region
      %s36 = ssub.s32 1024, 1024
      %37 = vsyncadd [#allocation8], %s36
      %s38 = sshll.u32 [#allocation7], 4
      %s39 = int_to_ptr.vmem [resolvable:$true] %s38
      %44 = dma.hbm_to_vmem [thread:$0]  %s3, 1024, %s39, [#allocation8], 128, 128, 8
    $region13: #{tpu_custom_call.1} parent=1 // pred_fallthru
      _
    // Predicated region
    $region14: #{tpu_custom_call.1} parent=1 // pred_check
      _
    $region15: #{tpu_custom_call.1} parent=1 // pred_check_branch
      %46 = sbr.rel (0) target = $region17
    $region16: #{tpu_custom_call.1} parent=1 // pred_region
      _
    $region17: #{tpu_custom_call.1} parent=1 // pred_fallthru
      _
    // Predicated region
    $region18: #{tpu_custom_call.1} parent=1 // pred_check
      _
    $region19: #{tpu_custom_call.1} parent=1 // pred_check_branch
      %48 = sbr.rel (0) target = $region21
    $region20: #{tpu_custom_call.1} parent=1 // pred_region
      _
    $region21: #{tpu_custom_call.1} parent=1 // pred_fallthru
      _
    // Predicated region
    $region22: #{tpu_custom_call.1} parent=1 // pred_check
      _
    $region23: #{tpu_custom_call.1} parent=1 // pred_check_branch
      %50 = sbr.rel (0) target = $region25
    $region24: #{tpu_custom_call.1} parent=1 // pred_region
      %s52 = ssub.s32 64, 64
      %53 = vsyncadd [#allocation8], %s52
      %s55 = sshll.u32 [#allocation9], 4
      %s56 = int_to_ptr.vmem [resolvable:$true] %s55
      %58 = dma.hbm_to_vmem [thread:$0]  %s6, 64, %s56, [#allocation8]
    $region25: #{tpu_custom_call.1} parent=1 // pred_fallthru
      _
    // Predicated region
    $region26: #{tpu_custom_call.1} parent=1 // pred_check
      _
    $region27: #{tpu_custom_call.1} parent=1 // pred_check_branch
      %60 = sbr.rel (0) target = $region29
    $region28: #{tpu_custom_call.1} parent=1 // pred_region
      %61 = dma.done [#allocation5], 16
    $region29: #{tpu_custom_call.1} parent=1 // pred_fallthru
      _
    // Predicated region
    $region30: #{tpu_custom_call.1} parent=1 // pred_check
      _
    $region31: #{tpu_custom_call.1} parent=1 // pred_check_branch
      %63 = sbr.rel (0) target = $region33
    $region32: #{tpu_custom_call.1} parent=1 // pred_region
      %64 = dma.done [#allocation8], 1024
    $region33: #{tpu_custom_call.1} parent=1 // pred_fallthru
      _
    // Predicated region
    $region34: #{tpu_custom_call.1} parent=1 // pred_check
      _
    $region35: #{tpu_custom_call.1} parent=1 // pred_check_branch
      %66 = sbr.rel (0) target = $region37
    $region36: #{tpu_custom_call.1} parent=1 // pred_region
      %67 = dma.done [#allocation8], 64
    $region37: #{tpu_custom_call.1} parent=1 // pred_fallthru
      _
    %v68 = vld [vmem:[#allocation9] sm:$0x1]
    %v69 = vld [vmem:[#allocation9 + $0x1] sm:$0x1]
    %v70 = vld [vmem:[#allocation9 + $0x2] sm:$0x1]
    %v71 = vld [vmem:[#allocation9 + $0x3] sm:$0x1]
    %v72 = vld [vmem:[#allocation4] sm:$0x1]
    loop: start=0, step=1, limit=8
    $region38: #{tpu_custom_call.1} parent=1 // loop_pre_header
      _
    $region39: #{tpu_custom_call.1} parent=1 // loop_header
      %s74 = sphi 0, %s78
      %p75 = scmp.ge.s32.totalorder %s74, 8
      %v79 = vphi %v72, %v206
    $region40: #{tpu_custom_call.1} parent=1 // loop_header_branch
      %77 = sbr.rel (%p75) target = $region44
    $region41: #{tpu_custom_call.1} parent=1 // loop_body
      %s80 = sld [smem:[#allocation3 + %s74]]
      %s81 = scalar_lea.vmem %s1, %s80
      %v82 = vld [vmem:[%s81] sm:$0x1]
      %84 = vrot.lane.b32.xlu0 %v79, 32
      %v85 = vpop.permute.xlu0 %84
      %vm87 = vcmask 261120
      %v88 = vsel %vm87, %v82, %v85
      %v89 = vld [vmem:[#allocation7] sm:$0xff]
      %v90 = vld [vmem:[#allocation7 + $0x8] sm:$0xff]
      %v91 = vld [vmem:[#allocation7 + $0x10] sm:$0xff]
      %v92 = vld [vmem:[#allocation7 + $0x18] sm:$0xff]
      %v93 = vld [vmem:[#allocation7 + $0x20] sm:$0xff]
      %v94 = vld [vmem:[#allocation7 + $0x28] sm:$0xff]
      %v95 = vld [vmem:[#allocation7 + $0x30] sm:$0xff]
      %v96 = vld [vmem:[#allocation7 + $0x38] sm:$0xff]
      %vm97 = vcmask 523264
      %v99 = vsel %vm97, %v88, 0
      %101 = vmatprep.subr.mxu0 0.0
      %102 = vmatpush1.msra.mxu0 0.0
      %103 = vmatprep.subr.mxu0 0.0
      %104 = vmatpush1.msra.mxu0 0.0
      %105 = vmatprep.subr.mxu0 0.0
      %106 = vmatpush1.msra.mxu0 0.0
      %107 = vmatprep.subr.mxu0 0.0
      %108 = vmatpush1.msra.mxu0 0.0
      %109 = vmatprep.subr.mxu0 0.0
      %110 = vmatpush1.msra.mxu0 0.0
      %111 = vmatprep.subr.mxu0 0.0
      %112 = vmatpush1.msra.mxu0 0.0
      %113 = vmatprep.subr.mxu0 0.0
      %114 = vmatpush1.msra.mxu0 0.0
      %115 = vmatprep.subr.mxu0 0.0
      %116 = vmatpush1.msra.mxu0 0.0
      %117 = vmatprep.subr.mxu0 0.0
      %118 = vmatpush1.msra.mxu0 %v96
      %119 = vmatprep.subr.mxu0 0.0
      %120 = vmatpush1.msra.mxu0 %v95
      %121 = vmatprep.subr.mxu0 0.0
      %122 = vmatpush1.msra.mxu0 %v94
      %123 = vmatprep.subr.mxu0 0.0
      %124 = vmatpush1.msra.mxu0 %v93
      %125 = vmatprep.subr.mxu0 0.0
      %126 = vmatpush1.msra.mxu0 %v92
      %127 = vmatprep.subr.mxu0 0.0
      %128 = vmatpush1.msra.mxu0 %v91
      %129 = vmatprep.subr.mxu0 0.0
      %130 = vmatpush1.msra.mxu0 %v90
      %131 = vmatprep.subr.mxu0 0.0
      %132 = vmatpush1.msra.mxu0 %v89
      %133 = vmatprep.subr.mxu0 0.0
      %134 = vmatpush2.msra.mxu0 0.0
      %135 = vmatprep.subr.mxu0 0.0
      %136 = vmatpush2.msra.mxu0 0.0
      %137 = vmatprep.subr.mxu0 0.0
      %138 = vmatpush2.msra.mxu0 0.0
      %139 = vmatprep.subr.mxu0 0.0
      %140 = vmatpush2.msra.mxu0 0.0
      %141 = vmatprep.subr.mxu0 0.0
      %142 = vmatpush2.msra.mxu0 0.0
      %143 = vmatprep.subr.mxu0 0.0
      %144 = vmatpush2.msra.mxu0 0.0
      %145 = vmatprep.subr.mxu0 0.0
      %146 = vmatpush2.msra.mxu0 0.0
      %147 = vmatprep.subr.mxu0 0.0
      %148 = vmatpush2.msra.mxu0 0.0
      %149 = vmatprep.subr.mxu0 0.0
      %150 = vmatpush2.msra.mxu0 0.0
      %151 = vmatprep.subr.mxu0 0.0
      %152 = vmatpush2.msra.mxu0 0.0
      %153 = vmatprep.subr.mxu0 0.0
      %154 = vmatpush2.msra.mxu0 0.0
      %155 = vmatprep.subr.mxu0 0.0
      %156 = vmatpush2.msra.mxu0 0.0
      %157 = vmatprep.subr.mxu0 0.0
      %158 = vmatpush2.msra.mxu0 0.0
      %159 = vmatprep.subr.mxu0 0.0
      %160 = vmatpush2.msra.mxu0 0.0
      %161 = vmatprep.subr.mxu0 0.0
      %162 = vmatpush2.msra.mxu0 0.0
      %163 = vmatprep.subr.mxu0 0.0
      %164 = vmatpush2.msra.mxu0 0.0
      %165 = vmatprep.mubr.f32.mxu0 0.0
      %166 = vmatmul.mubr.f32.gmra.mxu0 %v99
      %v167 = vpop.f32.mrf.mxu0
      %v168 = vadd.f32 %v68, %v167
      %v169 = vpop.f32.mrf.mxu0
      %170 = vdwg.mxu0
      %v171 = vxor.u32 %v168, 2147483648
      %v172 = vmul.f32 %v171, 1.442695
      %v173 = vpow.pop %v172
      %v174 = vadd.f32 %v173, 1.0
      %v175 = vrcp.pop %v174
      %v176 = vmul.f32 1.0, %v175
      %178 = vrot.lane.b32.xlu0 %v168, 32
      %v179 = vpop.permute.xlu0 %178
      %v181 = vmul.f32 %v176, %v179
      %183 = vrot.lane.b32.xlu0 %v181, 64
      %v184 = vpop.permute.xlu0 %183
      %v186 = vadd.f32 %v168, %v184
      %v187 = vtanh.pop %v186
      %v188 = vsub.f32 1.0, %v176
      %190 = vrot.lane.b32.xlu0 %v187, 96
      %v191 = vpop.permute.xlu0 %190
      %v193 = vmul.f32 %v188, %v191
      %v194 = vmul.f32 %v176, %v85
      %v195 = vadd.f32 %v193, %v194
      %v196 = vld [vmem:[%s4] sm:$0xff]
      %v197 = vld [vmem:[%s4 + $0x8] sm:$0xff]
      %v198 = vld [vmem:[%s4 + $0x18] sm:$0xff]
      %v199 = vld [vmem:[%s4 + $0x20] sm:$0xff]
      %v200 = vld [vmem:[%s4 + $0x30] sm:$0xff]
      %v201 = vld [vmem:[%s4 + $0x38] sm:$0xff]
      %v202 = vld [vmem:[%s4 + $0x48] sm:$0xff]
      %v203 = vld [vmem:[%s4 + $0x50] sm:$0xff]
      %205 = vrot.lane.b32.xlu0 %v195, 96
      %v206 = vpop.permute.xlu0 %205
      %v207 = vsel %vm87, %v206, 0
      %209 = vmatprep.subr.mxu0 0.0
      %210 = vmatpush1.msra.mxu0 0.0
      %211 = vmatprep.subr.mxu0 0.0
      %212 = vmatpush1.msra.mxu0 0.0
      %213 = vmatprep.subr.mxu0 0.0
      %214 = vmatpush1.msra.mxu0 0.0
      %215 = vmatprep.subr.mxu0 0.0
      %216 = vmatpush1.msra.mxu0 0.0
      %217 = vmatprep.subr.mxu0 0.0
      %218 = vmatpush1.msra.mxu0 0.0
      %219 = vmatprep.subr.mxu0 0.0
      %220 = vmatpush1.msra.mxu0 0.0
      %221 = vmatprep.subr.mxu0 0.0
      %222 = vmatpush1.msra.mxu0 0.0
      %223 = vmatprep.subr.mxu0 0.0
      %224 = vmatpush1.msra.mxu0 0.0
      %225 = vmatprep.subr.mxu0 0.0
      %226 = vmatpush1.msra.mxu0 0.0
      %227 = vmatprep.subr.mxu0 0.0
      %228 = vmatpush1.msra.mxu0 0.0
      %229 = vmatprep.subr.mxu0 0.0
      %230 = vmatpush1.msra.mxu0 0.0
      %231 = vmatprep.subr.mxu0 0.0
      %232 = vmatpush1.msra.mxu0 0.0
      %233 = vmatprep.subr.mxu0 %v203
      %234 = vmatpush1.msra.mxu0 %v202
      %235 = vmatprep.subr.mxu0 %v201
      %236 = vmatpush1.msra.mxu0 %v200
      %237 = vmatprep.subr.mxu0 %v199
      %238 = vmatpush1.msra.mxu0 %v198
      %239 = vmatprep.subr.mxu0 %v197
      %240 = vmatpush1.msra.mxu0 %v196
      %241 = vmatprep.subr.mxu0 0.0
      %242 = vmatpush2.msra.mxu0 0.0
      %243 = vmatprep.subr.mxu0 0.0
      %244 = vmatpush2.msra.mxu0 0.0
      %245 = vmatprep.subr.mxu0 0.0
      %246 = vmatpush2.msra.mxu0 0.0
      %247 = vmatprep.subr.mxu0 0.0
      %248 = vmatpush2.msra.mxu0 0.0
      %249 = vmatprep.subr.mxu0 0.0
      %250 = vmatpush2.msra.mxu0 0.0
      %251 = vmatprep.subr.mxu0 0.0
      %252 = vmatpush2.msra.mxu0 0.0
      %253 = vmatprep.subr.mxu0 0.0
      %254 = vmatpush2.msra.mxu0 0.0
      %255 = vmatprep.subr.mxu0 0.0
      %256 = vmatpush2.msra.mxu0 0.0
      %257 = vmatprep.subr.mxu0 0.0
      %258 = vmatpush2.msra.mxu0 0.0
      %259 = vmatprep.subr.mxu0 0.0
      %260 = vmatpush2.msra.mxu0 0.0
      %261 = vmatprep.subr.mxu0 0.0
      %262 = vmatpush2.msra.mxu0 0.0
      %263 = vmatprep.subr.mxu0 0.0
      %264 = vmatpush2.msra.mxu0 0.0
      %265 = vmatprep.subr.mxu0 0.0
      %266 = vmatpush2.msra.mxu0 0.0
      %267 = vmatprep.subr.mxu0 0.0
      %268 = vmatpush2.msra.mxu0 0.0
      %269 = vmatprep.subr.mxu0 0.0
      %270 = vmatpush2.msra.mxu0 0.0
      %271 = vmatprep.subr.mxu0 0.0
      %272 = vmatpush2.msra.mxu0 0.0
      %273 = vmatprep.mubr.f32.mxu0 0.0
      %274 = vmatmul.mubr.f32.gmra.mxu0 %v207
      %v275 = vpop.f32.mrf.mxu0
      %v276 = vadd.f32 0.0, %v275
      %v277 = vpop.f32.mrf.mxu0
      %v278 = vadd.f32 0.0, %v277
      %279 = vdwg.mxu0
      %v280 = vadd.f32 %v276, %v69
      %vm281 = vcmask 57344
      %v282 = vsel %vm281, %v280, -inf
      %283 = vmax.xlane.f32.xlu0 %v282
      %v284 = vpop.xlane.xlu0 %283
      %v285 = vsub.f32 %v280, %v284
      %v286 = vmul.f32 %v285, 1.442695
      %v287 = vpow.pop %v286
      %v288 = vsel %vm281, %v287, 0.0
      %289 = vadd.xlane.f32.xlu0 %v288
      %v290 = vpop.xlane.xlu0 %289
      %v291 = vrcp.pop %v290
      %v292 = vmul.f32 %v287, %v291
      %v293 = vld [vmem:[%s5] sm:$0xff]
      %vm294 = vcmask 64512
      %v296 = vsel %vm294, %v292, 0
      %298 = vmatprep.subr.mxu0 0.0
      %299 = vmatpush1.msra.mxu0 0.0
      %300 = vmatprep.subr.mxu0 0.0
      %301 = vmatpush1.msra.mxu0 0.0
      %302 = vmatprep.subr.mxu0 0.0
      %303 = vmatpush1.msra.mxu0 0.0
      %304 = vmatprep.subr.mxu0 0.0
      %305 = vmatpush1.msra.mxu0 0.0
      %306 = vmatprep.subr.mxu0 0.0
      %307 = vmatpush1.msra.mxu0 0.0
      %308 = vmatprep.subr.mxu0 0.0
      %309 = vmatpush1.msra.mxu0 0.0
      %310 = vmatprep.subr.mxu0 0.0
      %311 = vmatpush1.msra.mxu0 0.0
      %312 = vmatprep.subr.mxu0 0.0
      %313 = vmatpush1.msra.mxu0 0.0
      %314 = vmatprep.subr.mxu0 0.0
      %315 = vmatpush1.msra.mxu0 0.0
      %316 = vmatprep.subr.mxu0 0.0
      %317 = vmatpush1.msra.mxu0 0.0
      %318 = vmatprep.subr.mxu0 0.0
      %319 = vmatpush1.msra.mxu0 0.0
      %320 = vmatprep.subr.mxu0 0.0
      %321 = vmatpush1.msra.mxu0 0.0
      %322 = vmatprep.subr.mxu0 0.0
      %323 = vmatpush1.msra.mxu0 0.0
      %324 = vmatprep.subr.mxu0 0.0
      %325 = vmatpush1.msra.mxu0 0.0
      %326 = vmatprep.subr.mxu0 0.0
      %327 = vmatpush1.msra.mxu0 0.0
      %328 = vmatprep.subr.mxu0 0.0
      %329 = vmatpush1.msra.mxu0 %v293
      %330 = vmatprep.subr.mxu0 0.0
      %331 = vmatpush2.msra.mxu0 0.0
      %332 = vmatprep.subr.mxu0 0.0
      %333 = vmatpush2.msra.mxu0 0.0
      %334 = vmatprep.subr.mxu0 0.0
      %335 = vmatpush2.msra.mxu0 0.0
      %336 = vmatprep.subr.mxu0 0.0
      %337 = vmatpush2.msra.mxu0 0.0
      %338 = vmatprep.subr.mxu0 0.0
      %339 = vmatpush2.msra.mxu0 0.0
      %340 = vmatprep.subr.mxu0 0.0
      %341 = vmatpush2.msra.mxu0 0.0
      %342 = vmatprep.subr.mxu0 0.0
      %343 = vmatpush2.msra.mxu0 0.0
      %344 = vmatprep.subr.mxu0 0.0
      %345 = vmatpush2.msra.mxu0 0.0
      %346 = vmatprep.subr.mxu0 0.0
      %347 = vmatpush2.msra.mxu0 0.0
      %348 = vmatprep.subr.mxu0 0.0
      %349 = vmatpush2.msra.mxu0 0.0
      %350 = vmatprep.subr.mxu0 0.0
      %351 = vmatpush2.msra.mxu0 0.0
      %352 = vmatprep.subr.mxu0 0.0
      %353 = vmatpush2.msra.mxu0 0.0
      %354 = vmatprep.subr.mxu0 0.0
      %355 = vmatpush2.msra.mxu0 0.0
      %356 = vmatprep.subr.mxu0 0.0
      %357 = vmatpush2.msra.mxu0 0.0
      %358 = vmatprep.subr.mxu0 0.0
      %359 = vmatpush2.msra.mxu0 0.0
      %360 = vmatprep.subr.mxu0 0.0
      %361 = vmatpush2.msra.mxu0 0.0
      %362 = vmatprep.mubr.f32.mxu0 0.0
      %363 = vmatmul.mubr.f32.gmra.mxu0 %v296
      %v364 = vpop.f32.mrf.mxu0
      %v365 = vadd.f32 0.0, %v364
      %v366 = vpop.f32.mrf.mxu0
      %367 = vdwg.mxu0
      %v368 = vadd.f32 %v278, %v365
      %v369 = vadd.f32 %v368, %v70
      %v370 = vtanh.pop %v369
      %v371 = vld [vmem:[%s4 + $0x10] sm:$0xff]
      %v372 = vld [vmem:[%s4 + $0x28] sm:$0xff]
      %v373 = vld [vmem:[%s4 + $0x40] sm:$0xff]
      %v374 = vld [vmem:[%s4 + $0x58] sm:$0xff]
      %v376 = vsel %vm87, %v370, 0
      %378 = vmatprep.subr.mxu0 0.0
      %379 = vmatpush1.msra.mxu0 0.0
      %380 = vmatprep.subr.mxu0 0.0
      %381 = vmatpush1.msra.mxu0 0.0
      %382 = vmatprep.subr.mxu0 0.0
      %383 = vmatpush1.msra.mxu0 0.0
      %384 = vmatprep.subr.mxu0 0.0
      %385 = vmatpush1.msra.mxu0 0.0
      %386 = vmatprep.subr.mxu0 0.0
      %387 = vmatpush1.msra.mxu0 0.0
      %388 = vmatprep.subr.mxu0 0.0
      %389 = vmatpush1.msra.mxu0 0.0
      %390 = vmatprep.subr.mxu0 0.0
      %391 = vmatpush1.msra.mxu0 0.0
      %392 = vmatprep.subr.mxu0 0.0
      %393 = vmatpush1.msra.mxu0 0.0
      %394 = vmatprep.subr.mxu0 0.0
      %395 = vmatpush1.msra.mxu0 0.0
      %396 = vmatprep.subr.mxu0 0.0
      %397 = vmatpush1.msra.mxu0 0.0
      %398 = vmatprep.subr.mxu0 0.0
      %399 = vmatpush1.msra.mxu0 0.0
      %400 = vmatprep.subr.mxu0 0.0
      %401 = vmatpush1.msra.mxu0 0.0
      %402 = vmatprep.subr.mxu0 0.0
      %403 = vmatpush1.msra.mxu0 %v374
      %404 = vmatprep.subr.mxu0 0.0
      %405 = vmatpush1.msra.mxu0 %v373
      %406 = vmatprep.subr.mxu0 0.0
      %407 = vmatpush1.msra.mxu0 %v372
      %408 = vmatprep.subr.mxu0 0.0
      %409 = vmatpush1.msra.mxu0 %v371
      %410 = vmatprep.subr.mxu0 0.0
      %411 = vmatpush2.msra.mxu0 0.0
      %412 = vmatprep.subr.mxu0 0.0
      %413 = vmatpush2.msra.mxu0 0.0
      %414 = vmatprep.subr.mxu0 0.0
      %415 = vmatpush2.msra.mxu0 0.0
      %416 = vmatprep.subr.mxu0 0.0
      %417 = vmatpush2.msra.mxu0 0.0
      %418 = vmatprep.subr.mxu0 0.0
      %419 = vmatpush2.msra.mxu0 0.0
      %420 = vmatprep.subr.mxu0 0.0
      %421 = vmatpush2.msra.mxu0 0.0
      %422 = vmatprep.subr.mxu0 0.0
      %423 = vmatpush2.msra.mxu0 0.0
      %424 = vmatprep.subr.mxu0 0.0
      %425 = vmatpush2.msra.mxu0 0.0
      %426 = vmatprep.subr.mxu0 0.0
      %427 = vmatpush2.msra.mxu0 0.0
      %428 = vmatprep.subr.mxu0 0.0
      %429 = vmatpush2.msra.mxu0 0.0
      %430 = vmatprep.subr.mxu0 0.0
      %431 = vmatpush2.msra.mxu0 0.0
      %432 = vmatprep.subr.mxu0 0.0
      %433 = vmatpush2.msra.mxu0 0.0
      %434 = vmatprep.subr.mxu0 0.0
      %435 = vmatpush2.msra.mxu0 0.0
      %436 = vmatprep.subr.mxu0 0.0
      %437 = vmatpush2.msra.mxu0 0.0
      %438 = vmatprep.subr.mxu0 0.0
      %439 = vmatpush2.msra.mxu0 0.0
      %440 = vmatprep.subr.mxu0 0.0
      %441 = vmatpush2.msra.mxu0 0.0
      %442 = vmatprep.mubr.f32.mxu0 0.0
      %443 = vmatmul.mubr.f32.gmra.mxu0 %v376
      %v444 = vpop.f32.mrf.mxu0
      %v445 = vadd.f32 0.0, %v444
      %v446 = vpop.f32.mrf.mxu0
      %447 = vdwg.mxu0
      %v448 = vadd.f32 %v445, %v71
      %vm449 = vcmask 516096
      %v450 = vsel %vm449, %v448, -inf
      %451 = vmax.xlane.f32.xlu0 %v450
      %v452 = vpop.xlane.xlu0 %451
      %v453 = vsub.f32 %v448, %v452
      %v454 = vmul.f32 %v453, 1.442695
      %v455 = vpow.pop %v454
      %v456 = vsel %vm449, %v455, 0.0
      %457 = vadd.xlane.f32.xlu0 %v456
      %v458 = vpop.xlane.xlu0 %457
      %v459 = vlog2.pop %v458
      %v460 = vmul.f32 %v459, 0.6931472
      %v461 = vsub.f32 %v453, %v460
      %462 = vrot.lane.b32.xlu0 %v195, 32
      %v463 = vpop.permute.xlu0 %462
      %465 = vrot.lane.b32.xlu0 %v292, 96
      %v466 = vpop.permute.xlu0 %465
      %v468 = vsel %vm97, %v461, %v463
      %vm469 = vcmask 785408
      %v470 = vsel %vm469, %v468, %v466
      %vm471 = vcmask 850944
      %v472 = vsel %vm471, %v470, 0.0
      %s473 = scalar_lea.vmem [#allocation10], %s74
      %474 = vst [vmem:[%s473] sm:$0x1] %v472
    $region42: #{tpu_custom_call.1} parent=1 // loop_footer
      %s78 = sadd.s32 1, %s74
    $region43: #{tpu_custom_call.1} parent=1 // loop_footer_branch
      %73 = sbr.rel target = $region39
    $region44: #{tpu_custom_call.1} parent=1 // loop_exit
      _
    // Predicated region
    $region45: #{tpu_custom_call.1} parent=1 // pred_check
      _
    $region46: #{tpu_custom_call.1} parent=1 // pred_check_branch
      %477 = sbr.rel (0) target = $region48
    $region47: #{tpu_custom_call.1} parent=1 // pred_region
      %s479 = ssub.s32 128, 128
      %480 = vsyncadd [#allocation6], %s479
      %s482 = sshll.u32 [#allocation10], 4
      %s483 = int_to_ptr.vmem [resolvable:$true] %s482
      %485 = dma.vmem_to_hbm [thread:$0]  %s483, 128, %s7, [#allocation6]
    $region48: #{tpu_custom_call.1} parent=1 // pred_fallthru
      _
    // Predicated region
    $region49: #{tpu_custom_call.1} parent=1 // pred_check
      _
    $region50: #{tpu_custom_call.1} parent=1 // pred_check_branch
      %487 = sbr.rel (0) target = $region52
    $region51: #{tpu_custom_call.1} parent=1 // pred_region
      %488 = dma.done [#allocation6], 128
    $region52: #{tpu_custom_call.1} parent=1 // pred_fallthru
      _
    %489 = vsyncpa [#allocation5], 1
    %490 = vsyncpa [#allocation8], 1
    %491 = vsyncpa [#allocation6], 1

</llo_original>
